<compile_context>
chip_gen: v7x
topology: tpu7x:2x2x1
jax: 0.10.0
libtpu: 0.0.40
codegen_flags: <defaults>
</compile_context>

<pallas_src>
import jax
import jax.numpy as jnp
from jax.experimental import pallas as pl
from jax.experimental.pallas import tpu as pltpu

INPUT_SIZE = 420                         # 60 bars x 7 features
HIDDEN = 128
ACTION_DIM = 3
CRITIC_HIDDEN = 64
H_CAT = 3 * HIDDEN + CRITIC_HIDDEN       # 448 fused hidden lanes
OUT_W = 128                              # lane-dense packed output width
MAX_TB = 512                             # batch-tile cap (VMEM ~4-5 MiB incl. buffers)


def fused_tactical_kernel(x_ref, w1_ref, b1_ref, w2_ref, b2_ref, out_ref):
    """Whole system forward: two matmuls + ReLU + packed softmax epilogue.

    x_ref:   (TB, 420)    flattened state block
    w1_ref:  (420, 448)   [fw-folded fvg | momentum | entry | summed critic] layer-1
    b1_ref:  (1, 448)
    w2_ref:  (448, 128)   block-diagonal layer-2 (+ critic head at lane 9)
    b2_ref:  (1, 128)
    out_ref: (TB, 128)    [0:3]=fvg, [3:6]=mom, [6:9]=entry, [9]=value, rest 0
    """
    x = x_ref[...]                                                        # (TB, 420)
    h = jnp.dot(x, w1_ref[...], preferred_element_type=jnp.float32) + b1_ref[...]
    h = jnp.maximum(h, 0.0)                                               # (TB, 448)
    z = jnp.dot(h, w2_ref[...], preferred_element_type=jnp.float32) + b2_ref[...]  # (TB, 128)

    lane = jax.lax.broadcasted_iota(jnp.int32, z.shape, 1)
    neg = jnp.float32(-1e30)
    one = jnp.float32(1.0)

    # Per-group masked maxes (3 XLU reductions), selected into a per-lane max.
    m = []
    for g in range(3):                                 # static unroll
        mask = (lane >= 3 * g) & (lane < 3 * g + 3)
        m.append(jnp.max(jnp.where(mask, z, neg), axis=-1, keepdims=True))
    m_lane = jnp.where(lane < 3, m[0],
                       jnp.where(lane < 6, m[1],
                                 jnp.where(lane < 9, m[2], z)))           # lanes >=9 -> exp(0)

    e = jnp.exp(z - m_lane)                            # ONE exp over the whole tile (EUP)

    # Per-group masked sums, selected into a per-lane exact reciprocal.
    s = []
    for g in range(3):
        mask = (lane >= 3 * g) & (lane < 3 * g + 3)
        s.append(jnp.sum(jnp.where(mask, e, 0.0), axis=-1, keepdims=True))
    inv = jnp.where(lane < 3, one / s[0],
                    jnp.where(lane < 6, one / s[1],
                              jnp.where(lane < 9, one / s[2], one)))      # exact divide
    probs = e * inv

    out_ref[...] = jnp.where(lane == 9, z, jnp.where(lane < 9, probs, 0.0))


# ----------------------------------------------------------------------------
# Parameter construction (mirrors the PyTorch init) + fusion into kernel layout
# ----------------------------------------------------------------------------

def _xavier_uniform(key, fan_in, fan_out, shape):
    bound = (6.0 / (fan_in + fan_out)) ** 0.5
    return jax.random.uniform(key, shape, jnp.float32, -bound, bound)


def init_raw_params(key):
    """Un-fused parameters, laid out as (in, out) -- the nn.Linear transpose."""
    keys = jax.random.split(key, 8)
    w1 = jnp.stack([_xavier_uniform(keys[i], INPUT_SIZE, HIDDEN, (INPUT_SIZE, HIDDEN))
                    for i in range(3)])                                   # (3, 420, 128)
    b1 = jnp.zeros((3, HIDDEN), jnp.float32)
    w2 = jnp.stack([_xavier_uniform(keys[3 + i], HIDDEN, ACTION_DIM, (HIDDEN, ACTION_DIM))
                    for i in range(3)])                                   # (3, 128, 3)
    b2 = jnp.zeros((3, ACTION_DIM), jnp.float32)

    wc1 = _xavier_uniform(keys[6], 3 * INPUT_SIZE, CRITIC_HIDDEN,
                          (3 * INPUT_SIZE, CRITIC_HIDDEN))                # (1260, 64)
    bc1 = jnp.zeros((CRITIC_HIDDEN,), jnp.float32)
    wc2 = _xavier_uniform(keys[7], CRITIC_HIDDEN, 1, (CRITIC_HIDDEN, 1))  # (64, 1)
    bc2 = jnp.zeros((1,), jnp.float32)

    fvg_w = jnp.tile(jnp.array([2.0, 2.0, 1.0, 0.5, 0.5, 0.3, 0.3], jnp.float32), 60)
    mom_w = jnp.tile(jnp.array([0.3, 0.3, 0.5, 0.2, 0.2, 2.0, 2.0], jnp.float32), 60)
    ent_w = jnp.tile(jnp.array([1.0, 1.0, 1.0, 0.8, 0.8, 0.8, 0.8], jnp.float32), 60)
    fw = jnp.stack([fvg_w, mom_w, ent_w])                                 # (3, 420)

    return dict(fw=fw, w1=w1, b1=b1, w2=w2, b2=b2,
                wc1=wc1, bc1=bc1, wc2=wc2, bc2=bc2)


def fuse_params(raw):
    """Fold and concatenate the raw parameters into the 4-operand kernel layout."""
    # --- layer 1: fold feature weights, pre-sum critic slabs, concat along N (no K pad)
    w1a = raw["fw"][:, :, None] * raw["w1"]                               # (3, 420, 128)
    wc1_sum = raw["wc1"].reshape(3, INPUT_SIZE, CRITIC_HIDDEN).sum(axis=0)  # (420, 64)
    w1_cat = jnp.concatenate([w1a[0], w1a[1], w1a[2], wc1_sum], axis=1)   # (420, 448)
    b1_cat = jnp.concatenate([raw["b1"][0], raw["b1"][1], raw["b1"][2],
                              raw["bc1"]])[None, :]                       # (1, 448)

    # --- layer 2: block-diagonal actor heads + critic head at lane 9
    w2_cat = jnp.zeros((H_CAT, OUT_W), jnp.float32)
    for a in range(3):
        w2_cat = w2_cat.at[a * HIDDEN:(a + 1) * HIDDEN,
                           3 * a:3 * a + ACTION_DIM].set(raw["w2"][a])
    w2_cat = w2_cat.at[3 * HIDDEN:, 9:10].set(raw["wc2"])                 # (448, 128)
    b2_cat = jnp.zeros((1, OUT_W), jnp.float32)
    for a in range(3):
        b2_cat = b2_cat.at[0, 3 * a:3 * a + ACTION_DIM].set(raw["b2"][a])
    b2_cat = b2_cat.at[0, 9].set(raw["bc2"][0])                           # (1, 128)

    return dict(w1=w1_cat, b1=b1_cat, w2=w2_cat, b2=b2_cat)


# ----------------------------------------------------------------------------
# Forward wrappers
# ----------------------------------------------------------------------------

def _round_up(a, b):
    return ((a + b - 1) // b) * b


def tactical_system_forward(state, fused):
    """Returns (fvg_probs, momentum_probs, entry_probs, value)."""
    if state.ndim == 3:
        x = state.reshape(state.shape[0], -1)
    else:
        x = state.reshape(1, -1)
    x = x.astype(jnp.float32)
    B = x.shape[0]
    assert x.shape[1] == INPUT_SIZE

    # Adaptive, sublane-aligned batch tile; cap keeps VMEM small and steps few.
    TB = min(_round_up(max(B, 1), 8), MAX_TB)
    nb = pl.cdiv(B, TB)
    B_pad = nb * TB
    if B_pad != B:
        x = jnp.pad(x, ((0, B_pad - B), (0, 0)))      # batch tail only; no K pad

    out = pl.pallas_call(
        fused_tactical_kernel,
        out_shape=jax.ShapeDtypeStruct((B_pad, OUT_W), jnp.float32),
        grid=(nb,),
        in_specs=[
            pl.BlockSpec((TB, INPUT_SIZE), lambda i: (i, 0)),   # x: per-block, full K=420
            pl.BlockSpec((INPUT_SIZE, H_CAT), lambda i: (0, 0)),  # weights stay resident
            pl.BlockSpec((1, H_CAT), lambda i: (0, 0)),
            pl.BlockSpec((H_CAT, OUT_W), lambda i: (0, 0)),
            pl.BlockSpec((1, OUT_W), lambda i: (0, 0)),
        ],
        out_specs=pl.BlockSpec((TB, OUT_W), lambda i: (i, 0)),
        compiler_params=pltpu.CompilerParams(
            dimension_semantics=("parallel",)),
    )(x, fused["w1"], fused["b1"], fused["w2"], fused["b2"])

    out = out[:B]
    return out[:, 0:3], out[:, 3:6], out[:, 6:9], out[:, 9]


def reference_forward(state, raw):
    """Pure-JAX mirror of the PyTorch module (for correctness checking)."""
    if state.ndim == 3:
        x = state.reshape(state.shape[0], -1).astype(jnp.float32)
    else:
        x = state.reshape(1, -1).astype(jnp.float32)
    probs = []
    for a in range(3):
        xw = x * raw["fw"][a]
        h = jnp.maximum(xw @ raw["w1"][a] + raw["b1"][a], 0.0)
        logits = h @ raw["w2"][a] + raw["b2"][a]
        probs.append(jax.nn.softmax(logits, axis=-1))
    xc = jnp.concatenate([x, x, x], axis=-1)
    hc = jnp.maximum(xc @ raw["wc1"] + raw["bc1"], 0.0)
    value = (hc @ raw["wc2"] + raw["bc2"])[..., 0]
    return probs[0], probs[1], probs[2], value


# TODO(synk): the PyTorch module's memory-manager tracking, cleanup/backward
# hooks, inference counting and temporary_tensor bookkeeping are runtime
# management no-ops for inference and have no Pallas equivalent; omitted.

if __name__ == "__main__":
    key = jax.random.PRNGKey(0)
    pkey, xkey, xkey2 = jax.random.split(key, 3)
    raw = init_raw_params(pkey)
    fused = fuse_params(raw)

    def _close(a, b, tol):
        return bool(jnp.max(jnp.abs(a - b)) < tol)

    # --- batch=1 (the only shape the PyTorch critic path is consistent for) ---
    state = jax.random.normal(xkey, (1, 60, 7), jnp.float32)
    fvg, mom, ent, value = tactical_system_forward(state, fused)
    jax.block_until_ready((fvg, mom, ent, value))

    assert fvg.shape == (1, 3) and mom.shape == (1, 3)
    assert ent.shape == (1, 3) and value.shape == (1,)
    for p in (fvg, mom, ent):
        assert abs(float(jnp.sum(p)) - 1.0) < 1e-3      # exact-divide softmax

    r_fvg, r_mom, r_ent, r_val = reference_forward(state, raw)
    assert _close(fvg, r_fvg, 3e-3)
    assert _close(mom, r_mom, 3e-3)
    assert _close(ent, r_ent, 3e-3)
    assert _close(value, r_val, 2e-2)

    # --- small batch with tail padding, to exercise the adaptive-TB path ---
    state_b = jax.random.normal(xkey2, (5, 60, 7), jnp.float32)
    fvg_b, mom_b, ent_b, val_b = tactical_system_forward(state_b, fused)
    jax.block_until_ready((fvg_b, mom_b, ent_b, val_b))
    rb_fvg, rb_mom, rb_ent, rb_val = reference_forward(state_b, raw)
    assert _close(fvg_b, rb_fvg, 3e-3)
    assert _close(mom_b, rb_mom, 3e-3)
    assert _close(ent_b, rb_ent, 3e-3)
    assert _close(val_b, rb_val, 2e-2)
    rowsums = jnp.concatenate([fvg_b.sum(-1), mom_b.sum(-1), ent_b.sum(-1)])
    assert bool(jnp.max(jnp.abs(rowsums - 1.0)) < 1e-3)

    print("KERNEL_OK")
</pallas_src>

<mosaic_0001>
module attributes {stable_mosaic.version = 11 : i64} {
  func.func @fused_tactical_kernel(%arg0: i32, %arg1: memref<8x420xf32, #tpu.memory_space<vmem>>, %arg2: memref<420x448xf32, #tpu.memory_space<vmem>>, %arg3: memref<1x448xf32, #tpu.memory_space<vmem>>, %arg4: memref<448x128xf32, #tpu.memory_space<vmem>>, %arg5: memref<1x128xf32, #tpu.memory_space<vmem>>, %arg6: memref<8x128xf32, #tpu.memory_space<vmem>>) attributes {dimension_semantics = [#tpu.dimension_semantics<parallel>], iteration_bounds = array<i64: 1>, scalar_prefetch = 0 : i64, scratch_operands = 0 : i64, tpu.core_type = #tpu.core_type<tc>, window_params = [{transform_indices = @transform_0, window_bounds = array<i64: 8, 420>}, {pipeline_mode = #tpu.pipeline_mode<synchronous>, transform_indices = @transform_1, window_bounds = array<i64: 420, 448>}, {pipeline_mode = #tpu.pipeline_mode<synchronous>, transform_indices = @transform_2, window_bounds = array<i64: 1, 448>}, {pipeline_mode = #tpu.pipeline_mode<synchronous>, transform_indices = @transform_3, window_bounds = array<i64: 448, 128>}, {pipeline_mode = #tpu.pipeline_mode<synchronous>, transform_indices = @transform_4, window_bounds = array<i64: 1, 128>}, {transform_indices = @transform_5, window_bounds = array<i64: 8, 128>}]} {
    %c0 = arith.constant 0 : index
    %c0_0 = arith.constant 0 : index
    %0 = vector.load %arg1[%c0, %c0_0] : memref<8x420xf32, #tpu.memory_space<vmem>>, vector<8x420xf32>
    %c0_1 = arith.constant 0 : index
    %c0_2 = arith.constant 0 : index
    %1 = vector.load %arg2[%c0_1, %c0_2] : memref<420x448xf32, #tpu.memory_space<vmem>>, vector<420x448xf32>
    %cst = arith.constant dense<0.000000e+00> : vector<8x448xf32>
    %2 = tpu.matmul %0, %1, %cst {dimension_numbers = #tpu.dot_dimension_numbers<[1], [0], [0], [1], [0, 0, 1, 1], [], []>} : vector<8x420xf32>, vector<420x448xf32>, vector<8x448xf32> -> vector<8x448xf32>
    %c0_3 = arith.constant 0 : index
    %c0_4 = arith.constant 0 : index
    %3 = vector.load %arg3[%c0_3, %c0_4] : memref<1x448xf32, #tpu.memory_space<vmem>>, vector<1x448xf32>
    %4 = vector.broadcast %3 : vector<1x448xf32> to vector<8x448xf32>
    %5 = arith.addf %2, %4 : vector<8x448xf32>
    %cst_5 = arith.constant 0.000000e+00 : f32
    %6 = vector.broadcast %cst_5 : f32 to vector<8x448xf32>
    %7 = arith.maximumf %5, %6 : vector<8x448xf32>
    %c0_6 = arith.constant 0 : index
    %c0_7 = arith.constant 0 : index
    %8 = vector.load %arg4[%c0_6, %c0_7] : memref<448x128xf32, #tpu.memory_space<vmem>>, vector<448x128xf32>
    %cst_8 = arith.constant dense<0.000000e+00> : vector<8x128xf32>
    %9 = tpu.matmul %7, %8, %cst_8 {dimension_numbers = #tpu.dot_dimension_numbers<[1], [0], [0], [1], [0, 0, 1, 1], [], []>} : vector<8x448xf32>, vector<448x128xf32>, vector<8x128xf32> -> vector<8x128xf32>
    %c0_9 = arith.constant 0 : index
    %c0_10 = arith.constant 0 : index
    %10 = vector.load %arg5[%c0_9, %c0_10] : memref<1x128xf32, #tpu.memory_space<vmem>>, vector<1x128xf32>
    %11 = vector.broadcast %10 : vector<1x128xf32> to vector<8x128xf32>
    %12 = arith.addf %9, %11 : vector<8x128xf32>
    %13 = tpu.iota {dimensions = array<i32: 1>} : vector<8x128xi32>
    %c0_i32 = arith.constant 0 : i32
    %14 = vector.broadcast %c0_i32 : i32 to vector<8x128xi32>
    %15 = arith.cmpi sge, %13, %14 : vector<8x128xi32>
    %c3_i32 = arith.constant 3 : i32
    %16 = vector.broadcast %c3_i32 : i32 to vector<8x128xi32>
    %17 = arith.cmpi slt, %13, %16 : vector<8x128xi32>
    %18 = arith.andi %15, %17 : vector<8x128xi1>
    %cst_11 = arith.constant -1.000000e+30 : f32
    %19 = vector.broadcast %cst_11 : f32 to vector<8x128xf32>
    %20 = arith.select %18, %12, %19 : vector<8x128xi1>, vector<8x128xf32>
    %cst_12 = arith.constant dense<0xFF800000> : vector<8xf32>
    %21 = vector.multi_reduction <maximumf>, %20, %cst_12 [1] : vector<8x128xf32> to vector<8xf32>
    %22 = vector.shape_cast %21 : vector<8xf32> to vector<8x1xf32>
    %c3_i32_13 = arith.constant 3 : i32
    %23 = vector.broadcast %c3_i32_13 : i32 to vector<8x128xi32>
    %24 = arith.cmpi sge, %13, %23 : vector<8x128xi32>
    %c6_i32 = arith.constant 6 : i32
    %25 = vector.broadcast %c6_i32 : i32 to vector<8x128xi32>
    %26 = arith.cmpi slt, %13, %25 : vector<8x128xi32>
    %27 = arith.andi %24, %26 : vector<8x128xi1>
    %cst_14 = arith.constant -1.000000e+30 : f32
    %28 = vector.broadcast %cst_14 : f32 to vector<8x128xf32>
    %29 = arith.select %27, %12, %28 : vector<8x128xi1>, vector<8x128xf32>
    %cst_15 = arith.constant dense<0xFF800000> : vector<8xf32>
    %30 = vector.multi_reduction <maximumf>, %29, %cst_15 [1] : vector<8x128xf32> to vector<8xf32>
    %31 = vector.shape_cast %30 : vector<8xf32> to vector<8x1xf32>
    %c6_i32_16 = arith.constant 6 : i32
    %32 = vector.broadcast %c6_i32_16 : i32 to vector<8x128xi32>
    %33 = arith.cmpi sge, %13, %32 : vector<8x128xi32>
    %c9_i32 = arith.constant 9 : i32
    %34 = vector.broadcast %c9_i32 : i32 to vector<8x128xi32>
    %35 = arith.cmpi slt, %13, %34 : vector<8x128xi32>
    %36 = arith.andi %33, %35 : vector<8x128xi1>
    %cst_17 = arith.constant -1.000000e+30 : f32
    %37 = vector.broadcast %cst_17 : f32 to vector<8x128xf32>
    %38 = arith.select %36, %12, %37 : vector<8x128xi1>, vector<8x128xf32>
    %cst_18 = arith.constant dense<0xFF800000> : vector<8xf32>
    %39 = vector.multi_reduction <maximumf>, %38, %cst_18 [1] : vector<8x128xf32> to vector<8xf32>
    %40 = vector.shape_cast %39 : vector<8xf32> to vector<8x1xf32>
    %c3_i32_19 = arith.constant 3 : i32
    %41 = vector.broadcast %c3_i32_19 : i32 to vector<8x128xi32>
    %42 = arith.cmpi slt, %13, %41 : vector<8x128xi32>
    %c6_i32_20 = arith.constant 6 : i32
    %43 = vector.broadcast %c6_i32_20 : i32 to vector<8x128xi32>
    %44 = arith.cmpi slt, %13, %43 : vector<8x128xi32>
    %c9_i32_21 = arith.constant 9 : i32
    %45 = vector.broadcast %c9_i32_21 : i32 to vector<8x128xi32>
    %46 = arith.cmpi slt, %13, %45 : vector<8x128xi32>
    %47 = vector.shape_cast %40 : vector<8x1xf32> to vector<8x1xf32>
    %48 = vector.broadcast %47 : vector<8x1xf32> to vector<8x128xf32>
    %49 = arith.select %46, %48, %12 : vector<8x128xi1>, vector<8x128xf32>
    %50 = vector.shape_cast %31 : vector<8x1xf32> to vector<8x1xf32>
    %51 = vector.broadcast %50 : vector<8x1xf32> to vector<8x128xf32>
    %52 = arith.select %44, %51, %49 : vector<8x128xi1>, vector<8x128xf32>
    %53 = vector.shape_cast %22 : vector<8x1xf32> to vector<8x1xf32>
    %54 = vector.broadcast %53 : vector<8x1xf32> to vector<8x128xf32>
    %55 = arith.select %42, %54, %52 : vector<8x128xi1>, vector<8x128xf32>
    %56 = arith.subf %12, %55 : vector<8x128xf32>
    %57 = math.exp %56 : vector<8x128xf32>
    %c0_i32_22 = arith.constant 0 : i32
    %58 = vector.broadcast %c0_i32_22 : i32 to vector<8x128xi32>
    %59 = arith.cmpi sge, %13, %58 : vector<8x128xi32>
    %c3_i32_23 = arith.constant 3 : i32
    %60 = vector.broadcast %c3_i32_23 : i32 to vector<8x128xi32>
    %61 = arith.cmpi slt, %13, %60 : vector<8x128xi32>
    %62 = arith.andi %59, %61 : vector<8x128xi1>
    %cst_24 = arith.constant 0.000000e+00 : f32
    %63 = vector.broadcast %cst_24 : f32 to vector<8x128xf32>
    %64 = arith.select %62, %57, %63 : vector<8x128xi1>, vector<8x128xf32>
    %cst_25 = arith.constant dense<0.000000e+00> : vector<8xf32>
    %65 = vector.multi_reduction <add>, %64, %cst_25 [1] : vector<8x128xf32> to vector<8xf32>
    %66 = vector.shape_cast %65 : vector<8xf32> to vector<8x1xf32>
    %c3_i32_26 = arith.constant 3 : i32
    %67 = vector.broadcast %c3_i32_26 : i32 to vector<8x128xi32>
    %68 = arith.cmpi sge, %13, %67 : vector<8x128xi32>
    %c6_i32_27 = arith.constant 6 : i32
    %69 = vector.broadcast %c6_i32_27 : i32 to vector<8x128xi32>
    %70 = arith.cmpi slt, %13, %69 : vector<8x128xi32>
    %71 = arith.andi %68, %70 : vector<8x128xi1>
    %cst_28 = arith.constant 0.000000e+00 : f32
    %72 = vector.broadcast %cst_28 : f32 to vector<8x128xf32>
    %73 = arith.select %71, %57, %72 : vector<8x128xi1>, vector<8x128xf32>
    %cst_29 = arith.constant dense<0.000000e+00> : vector<8xf32>
    %74 = vector.multi_reduction <add>, %73, %cst_29 [1] : vector<8x128xf32> to vector<8xf32>
    %75 = vector.shape_cast %74 : vector<8xf32> to vector<8x1xf32>
    %c6_i32_30 = arith.constant 6 : i32
    %76 = vector.broadcast %c6_i32_30 : i32 to vector<8x128xi32>
    %77 = arith.cmpi sge, %13, %76 : vector<8x128xi32>
    %c9_i32_31 = arith.constant 9 : i32
    %78 = vector.broadcast %c9_i32_31 : i32 to vector<8x128xi32>
    %79 = arith.cmpi slt, %13, %78 : vector<8x128xi32>
    %80 = arith.andi %77, %79 : vector<8x128xi1>
    %cst_32 = arith.constant 0.000000e+00 : f32
    %81 = vector.broadcast %cst_32 : f32 to vector<8x128xf32>
    %82 = arith.select %80, %57, %81 : vector<8x128xi1>, vector<8x128xf32>
    %cst_33 = arith.constant dense<0.000000e+00> : vector<8xf32>
    %83 = vector.multi_reduction <add>, %82, %cst_33 [1] : vector<8x128xf32> to vector<8xf32>
    %84 = vector.shape_cast %83 : vector<8xf32> to vector<8x1xf32>
    %c3_i32_34 = arith.constant 3 : i32
    %85 = vector.broadcast %c3_i32_34 : i32 to vector<8x128xi32>
    %86 = arith.cmpi slt, %13, %85 : vector<8x128xi32>
    %cst_35 = arith.constant 1.000000e+00 : f32
    %87 = vector.broadcast %cst_35 : f32 to vector<8x1xf32>
    %88 = arith.divf %87, %66 : vector<8x1xf32>
    %c6_i32_36 = arith.constant 6 : i32
    %89 = vector.broadcast %c6_i32_36 : i32 to vector<8x128xi32>
    %90 = arith.cmpi slt, %13, %89 : vector<8x128xi32>
    %cst_37 = arith.constant 1.000000e+00 : f32
    %91 = vector.broadcast %cst_37 : f32 to vector<8x1xf32>
    %92 = arith.divf %91, %75 : vector<8x1xf32>
    %c9_i32_38 = arith.constant 9 : i32
    %93 = vector.broadcast %c9_i32_38 : i32 to vector<8x128xi32>
    %94 = arith.cmpi slt, %13, %93 : vector<8x128xi32>
    %cst_39 = arith.constant 1.000000e+00 : f32
    %95 = vector.broadcast %cst_39 : f32 to vector<8x1xf32>
    %96 = arith.divf %95, %84 : vector<8x1xf32>
    %cst_40 = arith.constant 1.000000e+00 : f32
    %97 = vector.shape_cast %96 : vector<8x1xf32> to vector<8x1xf32>
    %98 = vector.broadcast %97 : vector<8x1xf32> to vector<8x128xf32>
    %99 = vector.broadcast %cst_40 : f32 to vector<8x128xf32>
    %100 = arith.select %94, %98, %99 : vector<8x128xi1>, vector<8x128xf32>
    %101 = vector.shape_cast %92 : vector<8x1xf32> to vector<8x1xf32>
    %102 = vector.broadcast %101 : vector<8x1xf32> to vector<8x128xf32>
    %103 = arith.select %90, %102, %100 : vector<8x128xi1>, vector<8x128xf32>
    %104 = vector.shape_cast %88 : vector<8x1xf32> to vector<8x1xf32>
    %105 = vector.broadcast %104 : vector<8x1xf32> to vector<8x128xf32>
    %106 = arith.select %86, %105, %103 : vector<8x128xi1>, vector<8x128xf32>
    %107 = arith.mulf %57, %106 : vector<8x128xf32>
    %c9_i32_41 = arith.constant 9 : i32
    %108 = vector.broadcast %c9_i32_41 : i32 to vector<8x128xi32>
    %109 = arith.cmpi eq, %13, %108 : vector<8x128xi32>
    %c9_i32_42 = arith.constant 9 : i32
    %110 = vector.broadcast %c9_i32_42 : i32 to vector<8x128xi32>
    %111 = arith.cmpi slt, %13, %110 : vector<8x128xi32>
    %cst_43 = arith.constant 0.000000e+00 : f32
    %112 = vector.broadcast %cst_43 : f32 to vector<8x128xf32>
    %113 = arith.select %111, %107, %112 : vector<8x128xi1>, vector<8x128xf32>
    %114 = arith.select %109, %12, %113 : vector<8x128xi1>, vector<8x128xf32>
    %c0_44 = arith.constant 0 : index
    %c0_45 = arith.constant 0 : index
    %115 = vector.load %arg6[%c0_44, %c0_45] : memref<8x128xf32, #tpu.memory_space<vmem>>, vector<8x128xf32>
    tpu.vector_store %arg6[%c0_44, %c0_45], %114 {strides = array<i32>} : memref<8x128xf32, #tpu.memory_space<vmem>>, vector<8x128xf32>,
    return
  }
  func.func @transform_0(%arg0: i32) -> (i32, i32) {
    %c0_i32 = arith.constant 0 : i32
    %c0_i32_0 = arith.constant 0 : i32
    return %arg0, %c0_i32 : i32, i32
  }
  func.func @transform_1(%arg0: i32) -> (i32, i32) {
    %c0_i32 = arith.constant 0 : i32
    %c0_i32_0 = arith.constant 0 : i32
    %c0_i32_1 = arith.constant 0 : i32
    return %c0_i32, %c0_i32_0 : i32, i32
  }
  func.func @transform_2(%arg0: i32) -> (i32, i32) {
    %c0_i32 = arith.constant 0 : i32
    %c0_i32_0 = arith.constant 0 : i32
    %c0_i32_1 = arith.constant 0 : i32
    return %c0_i32, %c0_i32_0 : i32, i32
  }
  func.func @transform_3(%arg0: i32) -> (i32, i32) {
    %c0_i32 = arith.constant 0 : i32
    %c0_i32_0 = arith.constant 0 : i32
    %c0_i32_1 = arith.constant 0 : i32
    return %c0_i32, %c0_i32_0 : i32, i32
  }
  func.func @transform_4(%arg0: i32) -> (i32, i32) {
    %c0_i32 = arith.constant 0 : i32
    %c0_i32_0 = arith.constant 0 : i32
    %c0_i32_1 = arith.constant 0 : i32
    return %c0_i32, %c0_i32_0 : i32, i32
  }
  func.func @transform_5(%arg0: i32) -> (i32, i32) {
    %c0_i32 = arith.constant 0 : i32
    %c0_i32_0 = arith.constant 0 : i32
    return %arg0, %c0_i32 : i32, i32
  }
}

</mosaic_0001>

<llo_original>
// kernel: tpu_custom_call.1
$region0: #{tpu_custom_call.1}
  #allocation0 [shape = 'u32[]', space=smem, size = 0x4, offset = 0x4, fixed_abs, tag = 'smem constant byte address 0x4 - core index']
  #allocation1 [shape = 'u32[144,128]{1,0:T(1,128)}', space=vmem, size = 0x12000, scoped, tag = 'internal scratch']
  %s0 = inlined_call_operand.hbm [shape: f32[8,420], index: 0, kind: input, shape index: {}]
  %s1 = inlined_call_operand.hbm [shape: f32[420,448], index: 1, kind: input, shape index: {}]
  %s2 = inlined_call_operand.vmem [shape: f32[1,448], index: 2, kind: input, shape index: {}]
  %s3 = inlined_call_operand.hbm [shape: f32[448,128], index: 3, kind: input, shape index: {}]
  %s4 = inlined_call_operand.vmem [shape: f32[1,128], index: 4, kind: input, shape index: {}]
  %s5 = inlined_call_operand.hbm [shape: f32[8,128], index: 5, kind: output, shape index: {}]
  %s6 = sld [smem:[#allocation0]]
  $region42: #{tpu_custom_call.1} parent=0
    _
  %s8 = ssub.s32 1, %s6
  %s9 = scalar_select 0, %s8, %s6
  $region1: #{tpu_custom_call.1} parent=0
    #allocation2 [shape = 'u8[16384]{0}', space=vmem, size = 0x4000, scoped, tag = 'input window, operand 0, single buffered']
    #allocation3 [shape = 's32[1]{0}', space=sflag, size = 0x4, scoped, tag = 'scoped memory for tpu_custom_call.1']
    #allocation4 [shape = 's32[1]{0}', space=sflag, size = 0x4, scoped, tag = 'scoped memory for tpu_custom_call.1']
    #allocation5 [shape = 'u8[868352]{0}', space=vmem, size = 0xd4000, scoped, tag = 'input window, operand 1, single buffered']
    #allocation6 [shape = 's32[1]{0}', space=sflag, size = 0x4, scoped, tag = 'scoped memory for tpu_custom_call.1']
    #allocation7 [shape = 'u8[229376]{0}', space=vmem, size = 0x38000, scoped, tag = 'input window, operand 3, single buffered']
    #allocation8 [shape = 'u8[4096]{0}', space=vmem, size = 0x1000, scoped, tag = 'output window, operand 0, single buffered']
    %10 = vsyncpa [#allocation3], 0
    %11 = vsyncpa [#allocation6], 0
    %12 = vsyncpa [#allocation4], 0
    // Predicated region
    $region2: #{tpu_custom_call.1} parent=1 // pred_check
      _
    $region3: #{tpu_custom_call.1} parent=1 // pred_check_branch
      %14 = sbr.rel (0) target = $region5
    $region4: #{tpu_custom_call.1} parent=1 // pred_region
      %s16 = ssub.s32 512, 512
      %17 = vsyncadd [#allocation3], %s16
      %s19 = sshll.u32 [#allocation2], 4
      %s20 = int_to_ptr.vmem [resolvable:$true] %s19
      %22 = dma.hbm_to_vmem [thread:$0]  %s0, 512, %s20, [#allocation3]
    $region5: #{tpu_custom_call.1} parent=1 // pred_fallthru
      _
    // Predicated region
    $region6: #{tpu_custom_call.1} parent=1 // pred_check
      _
    $region7: #{tpu_custom_call.1} parent=1 // pred_check_branch
      %24 = sbr.rel (0) target = $region9
    $region8: #{tpu_custom_call.1} parent=1 // pred_region
      %s26 = ssub.s32 27136, 27136
      %27 = vsyncadd [#allocation6], %s26
      %s28 = sshll.u32 [#allocation5], 4
      %s29 = int_to_ptr.vmem [resolvable:$true] %s28
      %34 = dma.hbm_to_vmem [thread:$0]  %s1, 27136, %s29, [#allocation6], 512, 512, 32
    $region9: #{tpu_custom_call.1} parent=1 // pred_fallthru
      _
    // Predicated region
    $region10: #{tpu_custom_call.1} parent=1 // pred_check
      _
    $region11: #{tpu_custom_call.1} parent=1 // pred_check_branch
      %36 = sbr.rel (0) target = $region13
    $region12: #{tpu_custom_call.1} parent=1 // pred_region
      _
    $region13: #{tpu_custom_call.1} parent=1 // pred_fallthru
      _
    // Predicated region
    $region14: #{tpu_custom_call.1} parent=1 // pred_check
      _
    $region15: #{tpu_custom_call.1} parent=1 // pred_check_branch
      %38 = sbr.rel (0) target = $region17
    $region16: #{tpu_custom_call.1} parent=1 // pred_region
      %s40 = ssub.s32 7168, 7168
      %41 = vsyncadd [#allocation6], %s40
      %s42 = sshll.u32 [#allocation7], 4
      %s43 = int_to_ptr.vmem [resolvable:$true] %s42
      %48 = dma.hbm_to_vmem [thread:$0]  %s3, 7168, %s43, [#allocation6], 128, 128, 8
    $region17: #{tpu_custom_call.1} parent=1 // pred_fallthru
      _
    // Predicated region
    $region18: #{tpu_custom_call.1} parent=1 // pred_check
      _
    $region19: #{tpu_custom_call.1} parent=1 // pred_check_branch
      %50 = sbr.rel (0) target = $region21
    $region20: #{tpu_custom_call.1} parent=1 // pred_region
      _
    $region21: #{tpu_custom_call.1} parent=1 // pred_fallthru
      _
    // Predicated region
    $region22: #{tpu_custom_call.1} parent=1 // pred_check
      _
    $region23: #{tpu_custom_call.1} parent=1 // pred_check_branch
      %52 = sbr.rel (0) target = $region25
    $region24: #{tpu_custom_call.1} parent=1 // pred_region
      %53 = dma.done [#allocation3], 512
    $region25: #{tpu_custom_call.1} parent=1 // pred_fallthru
      _
    // Predicated region
    $region26: #{tpu_custom_call.1} parent=1 // pred_check
      _
    $region27: #{tpu_custom_call.1} parent=1 // pred_check_branch
      %55 = sbr.rel (0) target = $region29
    $region28: #{tpu_custom_call.1} parent=1 // pred_region
      %56 = dma.done [#allocation6], 27136
    $region29: #{tpu_custom_call.1} parent=1 // pred_fallthru
      _
    // Predicated region
    $region30: #{tpu_custom_call.1} parent=1 // pred_check
      _
    $region31: #{tpu_custom_call.1} parent=1 // pred_check_branch
      %58 = sbr.rel (0) target = $region33
    $region32: #{tpu_custom_call.1} parent=1 // pred_region
      %59 = dma.done [#allocation6], 7168
    $region33: #{tpu_custom_call.1} parent=1 // pred_fallthru
      _
    %v60 = vld [vmem:[#allocation2] sm:$0xff]
    %v61 = vld [vmem:[#allocation2 + $0x8] sm:$0xff]
    %v62 = vld [vmem:[#allocation2 + $0x10] sm:$0xff]
    %v63 = vld [vmem:[#allocation2 + $0x18] sm:$0xff]
    %v64 = vld [vmem:[#allocation5] sm:$0xff]
    %v65 = vld [vmem:[#allocation5 + $0x8] sm:$0xff]
    %v66 = vld [vmem:[#allocation5 + $0x10] sm:$0xff]
    %v67 = vld [vmem:[#allocation5 + $0x18] sm:$0xff]
    %v68 = vld [vmem:[#allocation5 + $0x20] sm:$0xff]
    %v69 = vld [vmem:[#allocation5 + $0x28] sm:$0xff]
    %v70 = vld [vmem:[#allocation5 + $0x30] sm:$0xff]
    %v71 = vld [vmem:[#allocation5 + $0x38] sm:$0xff]
    %v72 = vld [vmem:[#allocation5 + $0x40] sm:$0xff]
    %v73 = vld [vmem:[#allocation5 + $0x48] sm:$0xff]
    %v74 = vld [vmem:[#allocation5 + $0x50] sm:$0xff]
    %v75 = vld [vmem:[#allocation5 + $0x58] sm:$0xff]
    %v76 = vld [vmem:[#allocation5 + $0x60] sm:$0xff]
    %v77 = vld [vmem:[#allocation5 + $0x68] sm:$0xff]
    %v78 = vld [vmem:[#allocation5 + $0x70] sm:$0xff]
    %v79 = vld [vmem:[#allocation5 + $0x78] sm:$0xff]
    %v80 = vld [vmem:[#allocation5 + $0x80] sm:$0xff]
    %v81 = vld [vmem:[#allocation5 + $0x88] sm:$0xff]
    %v82 = vld [vmem:[#allocation5 + $0x90] sm:$0xff]
    %v83 = vld [vmem:[#allocation5 + $0x98] sm:$0xff]
    %v84 = vld [vmem:[#allocation5 + $0xa0] sm:$0xff]
    %v85 = vld [vmem:[#allocation5 + $0xa8] sm:$0xff]
    %v86 = vld [vmem:[#allocation5 + $0xb0] sm:$0xff]
    %v87 = vld [vmem:[#allocation5 + $0xb8] sm:$0xff]
    %v88 = vld [vmem:[#allocation5 + $0xc0] sm:$0xff]
    %v89 = vld [vmem:[#allocation5 + $0xc8] sm:$0xff]
    %v90 = vld [vmem:[#allocation5 + $0xd0] sm:$0xff]
    %v91 = vld [vmem:[#allocation5 + $0xd8] sm:$0xff]
    %v92 = vld [vmem:[#allocation5 + $0xe0] sm:$0xff]
    %v93 = vld [vmem:[#allocation5 + $0xe8] sm:$0xff]
    %v94 = vld [vmem:[#allocation5 + $0xf0] sm:$0xff]
    %v95 = vld [vmem:[#allocation5 + $0xf8] sm:$0xff]
    %v96 = vld [vmem:[#allocation5 + $0x100] sm:$0xff]
    %v97 = vld [vmem:[#allocation5 + $0x108] sm:$0xff]
    %v98 = vld [vmem:[#allocation5 + $0x110] sm:$0xff]
    %v99 = vld [vmem:[#allocation5 + $0x118] sm:$0xff]
    %v100 = vld [vmem:[#allocation5 + $0x120] sm:$0xff]
    %v101 = vld [vmem:[#allocation5 + $0x128] sm:$0xff]
    %v102 = vld [vmem:[#allocation5 + $0x130] sm:$0xff]
    %v103 = vld [vmem:[#allocation5 + $0x138] sm:$0xff]
    %v104 = vld [vmem:[#allocation5 + $0x140] sm:$0xff]
    %v105 = vld [vmem:[#allocation5 + $0x148] sm:$0xff]
    %v106 = vld [vmem:[#allocation5 + $0x150] sm:$0xff]
    %v107 = vld [vmem:[#allocation5 + $0x158] sm:$0xff]
    %v108 = vld [vmem:[#allocation5 + $0x160] sm:$0xff]
    %v109 = vld [vmem:[#allocation5 + $0x168] sm:$0xff]
    %v110 = vld [vmem:[#allocation5 + $0x170] sm:$0xff]
    %v111 = vld [vmem:[#allocation5 + $0x178] sm:$0xff]
    %v112 = vld [vmem:[#allocation5 + $0x180] sm:$0xff]
    %v113 = vld [vmem:[#allocation5 + $0x188] sm:$0xff]
    %v114 = vld [vmem:[#allocation5 + $0x190] sm:$0xff]
    %v115 = vld [vmem:[#allocation5 + $0x198] sm:$0xff]
    %v116 = vld [vmem:[#allocation5 + $0x1a0] sm:$0xff]
    %v117 = vld [vmem:[#allocation5 + $0x1a8] sm:$0xff]
    %v118 = vld [vmem:[#allocation5 + $0x1b0] sm:$0xff]
    %v119 = vld [vmem:[#allocation5 + $0x1b8] sm:$0xff]
    %v120 = vld [vmem:[#allocation5 + $0x1c0] sm:$0xff]
    %v121 = vld [vmem:[#allocation5 + $0x1c8] sm:$0xff]
    %v122 = vld [vmem:[#allocation5 + $0x1d0] sm:$0xff]
    %v123 = vld [vmem:[#allocation5 + $0x1d8] sm:$0xff]
    %v124 = vld [vmem:[#allocation5 + $0x1e0] sm:$0xff]
    %v125 = vld [vmem:[#allocation5 + $0x1e8] sm:$0xff]
    %v126 = vld [vmem:[#allocation5 + $0x1f0] sm:$0xff]
    %v127 = vld [vmem:[#allocation5 + $0x1f8] sm:$0xff]
    %v128 = vld [vmem:[#allocation5 + $0x200] sm:$0xff]
    %v129 = vld [vmem:[#allocation5 + $0x208] sm:$0xff]
    %v130 = vld [vmem:[#allocation5 + $0x210] sm:$0xff]
    %v131 = vld [vmem:[#allocation5 + $0x218] sm:$0xff]
    %v132 = vld [vmem:[#allocation5 + $0x220] sm:$0xff]
    %v133 = vld [vmem:[#allocation5 + $0x228] sm:$0xff]
    %v134 = vld [vmem:[#allocation5 + $0x230] sm:$0xff]
    %v135 = vld [vmem:[#allocation5 + $0x238] sm:$0xff]
    %v136 = vld [vmem:[#allocation5 + $0x240] sm:$0xff]
    %v137 = vld [vmem:[#allocation5 + $0x248] sm:$0xff]
    %v138 = vld [vmem:[#allocation5 + $0x250] sm:$0xff]
    %v139 = vld [vmem:[#allocation5 + $0x258] sm:$0xff]
    %v140 = vld [vmem:[#allocation5 + $0x260] sm:$0xff]
    %v141 = vld [vmem:[#allocation5 + $0x268] sm:$0xff]
    %v142 = vld [vmem:[#allocation5 + $0x270] sm:$0xff]
    %v143 = vld [vmem:[#allocation5 + $0x278] sm:$0xff]
    %v144 = vld [vmem:[#allocation5 + $0x280] sm:$0xff]
    %v145 = vld [vmem:[#allocation5 + $0x288] sm:$0xff]
    %v146 = vld [vmem:[#allocation5 + $0x290] sm:$0xff]
    %v147 = vld [vmem:[#allocation5 + $0x298] sm:$0xff]
    %v148 = vld [vmem:[#allocation5 + $0x2a0] sm:$0xff]
    %v149 = vld [vmem:[#allocation5 + $0x2a8] sm:$0xff]
    %v150 = vld [vmem:[#allocation5 + $0x2b0] sm:$0xff]
    %v151 = vld [vmem:[#allocation5 + $0x2b8] sm:$0xff]
    %v152 = vld [vmem:[#allocation5 + $0x2c0] sm:$0xff]
    %v153 = vld [vmem:[#allocation5 + $0x2c8] sm:$0xff]
    %v154 = vld [vmem:[#allocation5 + $0x2d0] sm:$0xff]
    %v155 = vld [vmem:[#allocation5 + $0x2d8] sm:$0xff]
    %v156 = vld [vmem:[#allocation5 + $0x2e0] sm:$0xff]
    %v157 = vld [vmem:[#allocation5 + $0x2e8] sm:$0xff]
    %v158 = vld [vmem:[#allocation5 + $0x2f0] sm:$0xff]
    %v159 = vld [vmem:[#allocation5 + $0x2f8] sm:$0xff]
    %v160 = vld [vmem:[#allocation5 + $0x300] sm:$0xff]
    %v161 = vld [vmem:[#allocation5 + $0x308] sm:$0xff]
    %v162 = vld [vmem:[#allocation5 + $0x310] sm:$0xff]
    %v163 = vld [vmem:[#allocation5 + $0x318] sm:$0xff]
    %v164 = vld [vmem:[#allocation5 + $0x320] sm:$0xff]
    %v165 = vld [vmem:[#allocation5 + $0x328] sm:$0xff]
    %v166 = vld [vmem:[#allocation5 + $0x330] sm:$0xff]
    %v167 = vld [vmem:[#allocation5 + $0x338] sm:$0xff]
    %v168 = vld [vmem:[#allocation5 + $0x340] sm:$0xff]
    %v169 = vld [vmem:[#allocation5 + $0x348] sm:$0xff]
    %v170 = vld [vmem:[#allocation5 + $0x350] sm:$0xff]
    %v171 = vld [vmem:[#allocation5 + $0x358] sm:$0xff]
    %v172 = vld [vmem:[#allocation5 + $0x360] sm:$0xff]
    %v173 = vld [vmem:[#allocation5 + $0x368] sm:$0xff]
    %v174 = vld [vmem:[#allocation5 + $0x370] sm:$0xff]
    %v175 = vld [vmem:[#allocation5 + $0x378] sm:$0xff]
    %v176 = vld [vmem:[#allocation5 + $0x380] sm:$0xff]
    %v177 = vld [vmem:[#allocation5 + $0x388] sm:$0xff]
    %v178 = vld [vmem:[#allocation5 + $0x390] sm:$0xff]
    %v179 = vld [vmem:[#allocation5 + $0x398] sm:$0xff]
    %v180 = vld [vmem:[#allocation5 + $0x3a0] sm:$0xff]
    %v181 = vld [vmem:[#allocation5 + $0x3a8] sm:$0xff]
    %v182 = vld [vmem:[#allocation5 + $0x3b0] sm:$0xff]
    %v183 = vld [vmem:[#allocation5 + $0x3b8] sm:$0xff]
    %v184 = vld [vmem:[#allocation5 + $0x3c0] sm:$0xff]
    %v185 = vld [vmem:[#allocation5 + $0x3c8] sm:$0xff]
    %v186 = vld [vmem:[#allocation5 + $0x3d0] sm:$0xff]
    %v187 = vld [vmem:[#allocation5 + $0x3d8] sm:$0xff]
    %v188 = vld [vmem:[#allocation5 + $0x3e0] sm:$0xff]
    %v189 = vld [vmem:[#allocation5 + $0x3e8] sm:$0xff]
    %v190 = vld [vmem:[#allocation5 + $0x3f0] sm:$0xff]
    %v191 = vld [vmem:[#allocation5 + $0x3f8] sm:$0xff]
    %v192 = vld [vmem:[#allocation5 + $0x400] sm:$0xff]
    %v193 = vld [vmem:[#allocation5 + $0x408] sm:$0xff]
    %v194 = vld [vmem:[#allocation5 + $0x410] sm:$0xff]
    %v195 = vld [vmem:[#allocation5 + $0x418] sm:$0xff]
    %v196 = vld [vmem:[#allocation5 + $0x420] sm:$0xff]
    %v197 = vld [vmem:[#allocation5 + $0x428] sm:$0xff]
    %v198 = vld [vmem:[#allocation5 + $0x430] sm:$0xff]
    %v199 = vld [vmem:[#allocation5 + $0x438] sm:$0xff]
    %v200 = vld [vmem:[#allocation5 + $0x440] sm:$0xff]
    %v201 = vld [vmem:[#allocation5 + $0x448] sm:$0xff]
    %v202 = vld [vmem:[#allocation5 + $0x450] sm:$0xff]
    %v203 = vld [vmem:[#allocation5 + $0x458] sm:$0xff]
    %v204 = vld [vmem:[#allocation5 + $0x460] sm:$0xff]
    %v205 = vld [vmem:[#allocation5 + $0x468] sm:$0xff]
    %v206 = vld [vmem:[#allocation5 + $0x470] sm:$0xff]
    %v207 = vld [vmem:[#allocation5 + $0x478] sm:$0xff]
    %v208 = vld [vmem:[#allocation5 + $0x480] sm:$0xff]
    %v209 = vld [vmem:[#allocation5 + $0x488] sm:$0xff]
    %v210 = vld [vmem:[#allocation5 + $0x490] sm:$0xff]
    %v211 = vld [vmem:[#allocation5 + $0x498] sm:$0xff]
    %v212 = vld [vmem:[#allocation5 + $0x4a0] sm:$0xff]
    %v213 = vld [vmem:[#allocation5 + $0x4a8] sm:$0xff]
    %v214 = vld [vmem:[#allocation5 + $0x4b0] sm:$0xff]
    %v215 = vld [vmem:[#allocation5 + $0x4b8] sm:$0xff]
    %v216 = vld [vmem:[#allocation5 + $0x4c0] sm:$0xff]
    %v217 = vld [vmem:[#allocation5 + $0x4c8] sm:$0xff]
    %v218 = vld [vmem:[#allocation5 + $0x4d0] sm:$0xff]
    %v219 = vld [vmem:[#allocation5 + $0x4d8] sm:$0xff]
    %v220 = vld [vmem:[#allocation5 + $0x4e0] sm:$0xff]
    %v221 = vld [vmem:[#allocation5 + $0x4e8] sm:$0xff]
    %v222 = vld [vmem:[#allocation5 + $0x4f0] sm:$0xff]
    %v223 = vld [vmem:[#allocation5 + $0x4f8] sm:$0xff]
    %v224 = vld [vmem:[#allocation5 + $0x500] sm:$0xff]
    %v225 = vld [vmem:[#allocation5 + $0x508] sm:$0xff]
    %v226 = vld [vmem:[#allocation5 + $0x510] sm:$0xff]
    %v227 = vld [vmem:[#allocation5 + $0x518] sm:$0xff]
    %v228 = vld [vmem:[#allocation5 + $0x520] sm:$0xff]
    %v229 = vld [vmem:[#allocation5 + $0x528] sm:$0xff]
    %v230 = vld [vmem:[#allocation5 + $0x530] sm:$0xff]
    %v231 = vld [vmem:[#allocation5 + $0x538] sm:$0xff]
    %v232 = vld [vmem:[#allocation5 + $0x540] sm:$0xff]
    %v233 = vld [vmem:[#allocation5 + $0x548] sm:$0xff]
    %v234 = vld [vmem:[#allocation5 + $0x550] sm:$0xff]
    %v235 = vld [vmem:[#allocation5 + $0x558] sm:$0xff]
    %v236 = vld [vmem:[#allocation5 + $0x560] sm:$0xff]
    %v237 = vld [vmem:[#allocation5 + $0x568] sm:$0xff]
    %v238 = vld [vmem:[#allocation5 + $0x570] sm:$0xff]
    %v239 = vld [vmem:[#allocation5 + $0x578] sm:$0xff]
    %v240 = vld [vmem:[#allocation5 + $0x580] sm:$0xff]
    %v241 = vld [vmem:[#allocation5 + $0x588] sm:$0xff]
    %v242 = vld [vmem:[#allocation5 + $0x590] sm:$0xff]
    %v243 = vld [vmem:[#allocation5 + $0x598] sm:$0xff]
    %v244 = vld [vmem:[#allocation5 + $0x5a0] sm:$0xff]
    %v245 = vld [vmem:[#allocation5 + $0x5a8] sm:$0xff]
    %v246 = vld [vmem:[#allocation5 + $0x5b0] sm:$0xff]
    %v247 = vld [vmem:[#allocation5 + $0x5b8] sm:$0xff]
    %v248 = vld [vmem:[#allocation5 + $0x5c0] sm:$0xff]
    %v249 = vld [vmem:[#allocation5 + $0x5c8] sm:$0xff]
    %v250 = vld [vmem:[#allocation5 + $0x5d0] sm:$0xff]
    %v251 = vld [vmem:[#allocation5 + $0x5d8] sm:$0xff]
    %v252 = vld [vmem:[#allocation5 + $0x5e0] sm:$0xff]
    %v253 = vld [vmem:[#allocation5 + $0x5e8] sm:$0xff]
    %v254 = vld [vmem:[#allocation5 + $0x5f0] sm:$0xff]
    %v255 = vld [vmem:[#allocation5 + $0x5f8] sm:$0xff]
    %v256 = vld [vmem:[#allocation5 + $0x600] sm:$0xff]
    %v257 = vld [vmem:[#allocation5 + $0x608] sm:$0xff]
    %v258 = vld [vmem:[#allocation5 + $0x610] sm:$0xff]
    %v259 = vld [vmem:[#allocation5 + $0x618] sm:$0xff]
    %v260 = vld [vmem:[#allocation5 + $0x620] sm:$0xff]
    %v261 = vld [vmem:[#allocation5 + $0x628] sm:$0xff]
    %v262 = vld [vmem:[#allocation5 + $0x630] sm:$0xff]
    %v263 = vld [vmem:[#allocation5 + $0x638] sm:$0xff]
    %v264 = vld [vmem:[#allocation5 + $0x640] sm:$0xff]
    %v265 = vld [vmem:[#allocation5 + $0x648] sm:$0xff]
    %v266 = vld [vmem:[#allocation5 + $0x650] sm:$0xff]
    %v267 = vld [vmem:[#allocation5 + $0x658] sm:$0xff]
    %v268 = vld [vmem:[#allocation5 + $0x660] sm:$0xff]
    %v269 = vld [vmem:[#allocation5 + $0x668] sm:$0xff]
    %v270 = vld [vmem:[#allocation5 + $0x670] sm:$0xff]
    %v271 = vld [vmem:[#allocation5 + $0x678] sm:$0xff]
    %v272 = vld [vmem:[#allocation5 + $0x680] sm:$0xf]
    %v273 = vld [vmem:[#allocation5 + $0x688] sm:$0xf]
    %v274 = vld [vmem:[#allocation5 + $0x690] sm:$0xf]
    %v275 = vld [vmem:[#allocation5 + $0x698] sm:$0xf]
    %v276 = vld [vmem:[%s2] sm:$0xf]
    %v278 = vlaneseq
    %v279 = vshrl.u32 %v278, 7
    %v280 = vsub.s32 0, %v279
    %v281 = vrot.slane %v276, %v280
    %v282 = vlaneseq
    %v283 = vshrl.u32 %v282, 7
    %v284 = vsub.s32 1, %v283
    %v285 = vrot.slane %v276, %v284
    %v286 = vlaneseq
    %v287 = vshrl.u32 %v286, 7
    %v288 = vsub.s32 2, %v287
    %v289 = vrot.slane %v276, %v288
    %v290 = vlaneseq
    %v291 = vshrl.u32 %v290, 7
    %v292 = vsub.s32 3, %v291
    %v293 = vrot.slane %v276, %v292
    %vm298 = vcmask 293888
    %v300 = vsel %vm298, %v63, 0
    %vm302 = vcmask 1043456
    %v304 = vsel %vm302, %v272, 0
    %v307 = vsel %vm302, %v273, 0
    %v310 = vsel %vm302, %v274, 0
    %v313 = vsel %vm302, %v275, 0
    %315 = vmatprep.subr.mxu0 %v65
    %316 = vmatpush1.msra.mxu0 %v64
    %317 = vmatprep.subr.mxu0 %v69
    %318 = vmatpush1.msra.mxu0 %v68
    %319 = vmatprep.subr.mxu0 %v73
    %320 = vmatpush1.msra.mxu0 %v72
    %321 = vmatprep.subr.mxu0 %v77
    %322 = vmatpush1.msra.mxu0 %v76
    %323 = vmatprep.subr.mxu0 %v81
    %324 = vmatpush1.msra.mxu0 %v80
    %325 = vmatprep.subr.mxu0 %v85
    %326 = vmatpush1.msra.mxu0 %v84
    %327 = vmatprep.subr.mxu0 %v89
    %328 = vmatpush1.msra.mxu0 %v88
    %329 = vmatprep.subr.mxu0 %v93
    %330 = vmatpush1.msra.mxu0 %v92
    %331 = vmatprep.subr.mxu0 %v97
    %332 = vmatpush1.msra.mxu0 %v96
    %333 = vmatprep.subr.mxu0 %v101
    %334 = vmatpush1.msra.mxu0 %v100
    %335 = vmatprep.subr.mxu0 %v105
    %336 = vmatpush1.msra.mxu0 %v104
    %337 = vmatprep.subr.mxu0 %v109
    %338 = vmatpush1.msra.mxu0 %v108
    %339 = vmatprep.subr.mxu0 %v113
    %340 = vmatpush1.msra.mxu0 %v112
    %341 = vmatprep.subr.mxu0 %v117
    %342 = vmatpush1.msra.mxu0 %v116
    %343 = vmatprep.subr.mxu0 %v121
    %344 = vmatpush1.msra.mxu0 %v120
    %345 = vmatprep.subr.mxu0 %v125
    %346 = vmatpush1.msra.mxu0 %v124
    %347 = vmatprep.subr.mxu0 %v129
    %348 = vmatpush1.msra.mxu0 %v128
    %349 = vmatprep.subr.mxu0 %v133
    %350 = vmatpush1.msra.mxu0 %v132
    %351 = vmatprep.subr.mxu0 %v137
    %352 = vmatpush1.msra.mxu0 %v136
    %353 = vmatprep.subr.mxu0 %v141
    %354 = vmatpush1.msra.mxu0 %v140
    %355 = vmatprep.subr.mxu0 %v145
    %356 = vmatpush1.msra.mxu0 %v144
    %357 = vmatprep.subr.mxu0 %v149
    %358 = vmatpush1.msra.mxu0 %v148
    %359 = vmatprep.subr.mxu0 %v153
    %360 = vmatpush1.msra.mxu0 %v152
    %361 = vmatprep.subr.mxu0 %v157
    %362 = vmatpush1.msra.mxu0 %v156
    %363 = vmatprep.subr.mxu0 %v161
    %364 = vmatpush1.msra.mxu0 %v160
    %365 = vmatprep.subr.mxu0 %v165
    %366 = vmatpush1.msra.mxu0 %v164
    %367 = vmatprep.subr.mxu0 %v169
    %368 = vmatpush1.msra.mxu0 %v168
    %369 = vmatprep.subr.mxu0 %v173
    %370 = vmatpush1.msra.mxu0 %v172
    %371 = vmatprep.subr.mxu0 %v177
    %372 = vmatpush1.msra.mxu0 %v176
    %373 = vmatprep.subr.mxu0 %v181
    %374 = vmatpush1.msra.mxu0 %v180
    %375 = vmatprep.subr.mxu0 %v185
    %376 = vmatpush1.msra.mxu0 %v184
    %377 = vmatprep.subr.mxu0 %v189
    %378 = vmatpush1.msra.mxu0 %v188
    %379 = vmatprep.mubr.f32.mxu0 %v61
    %380 = vmatmul.mubr.f32.gmra.mrb[0].mxu0 %v60
    %v381 = vpop.f32.mrb[0].mxu0
    %v382 = vadd.f32 %v281, %v381
    %v383 = vpop.f32.mrb[0].mxu0
    %v384 = vadd.f32 %v285, %v383
    %385 = vdwg.mxu0
    %386 = vmatprep.subr.mxu0 %v193
    %387 = vmatpush1.msra.mxu0 %v192
    %388 = vmatprep.subr.mxu0 %v197
    %389 = vmatpush1.msra.mxu0 %v196
    %390 = vmatprep.subr.mxu0 %v201
    %391 = vmatpush1.msra.mxu0 %v200
    %392 = vmatprep.subr.mxu0 %v205
    %393 = vmatpush1.msra.mxu0 %v204
    %394 = vmatprep.subr.mxu0 %v209
    %395 = vmatpush1.msra.mxu0 %v208
    %396 = vmatprep.subr.mxu0 %v213
    %397 = vmatpush1.msra.mxu0 %v212
    %398 = vmatprep.subr.mxu0 %v217
    %399 = vmatpush1.msra.mxu0 %v216
    %400 = vmatprep.subr.mxu0 %v221
    %401 = vmatpush1.msra.mxu0 %v220
    %402 = vmatprep.subr.mxu0 %v225
    %403 = vmatpush1.msra.mxu0 %v224
    %404 = vmatprep.subr.mxu0 %v229
    %405 = vmatpush1.msra.mxu0 %v228
    %406 = vmatprep.subr.mxu0 %v233
    %407 = vmatpush1.msra.mxu0 %v232
    %408 = vmatprep.subr.mxu0 %v237
    %409 = vmatpush1.msra.mxu0 %v236
    %410 = vmatprep.subr.mxu0 %v241
    %411 = vmatpush1.msra.mxu0 %v240
    %412 = vmatprep.subr.mxu0 %v245
    %413 = vmatpush1.msra.mxu0 %v244
    %414 = vmatprep.subr.mxu0 %v249
    %415 = vmatpush1.msra.mxu0 %v248
    %416 = vmatprep.subr.mxu0 %v253
    %417 = vmatpush1.msra.mxu0 %v252
    %418 = vmatprep.subr.mxu0 %v257
    %419 = vmatpush1.msra.mxu0 %v256
    %420 = vmatprep.subr.mxu0 %v261
    %421 = vmatpush1.msra.mxu0 %v260
    %422 = vmatprep.subr.mxu0 %v265
    %423 = vmatpush1.msra.mxu0 %v264
    %424 = vmatprep.subr.mxu0 %v269
    %425 = vmatpush1.msra.mxu0 %v268
    %426 = vmatprep.subr.mxu0 %v307
    %427 = vmatpush1.msra.mxu0 %v304
    %428 = vmatprep.subr.mxu0 0.0
    %429 = vmatpush1.msra.mxu0 0.0
    %430 = vmatprep.subr.mxu0 0.0
    %431 = vmatpush1.msra.mxu0 0.0
    %432 = vmatprep.subr.mxu0 0.0
    %433 = vmatpush1.msra.mxu0 0.0
    %434 = vmatprep.subr.mxu0 0.0
    %435 = vmatpush1.msra.mxu0 0.0
    %436 = vmatprep.subr.mxu0 0.0
    %437 = vmatpush1.msra.mxu0 0.0
    %438 = vmatprep.subr.mxu0 0.0
    %439 = vmatpush1.msra.mxu0 0.0
    %440 = vmatprep.subr.mxu0 0.0
    %441 = vmatpush1.msra.mxu0 0.0
    %442 = vmatprep.subr.mxu0 0.0
    %443 = vmatpush1.msra.mxu0 0.0
    %444 = vmatprep.subr.mxu0 0.0
    %445 = vmatpush1.msra.mxu0 0.0
    %446 = vmatprep.subr.mxu0 0.0
    %447 = vmatpush1.msra.mxu0 0.0
    %448 = vmatprep.subr.mxu0 0.0
    %449 = vmatpush1.msra.mxu0 0.0
    %450 = vmatprep.mubr.f32.mxu0 %v300
    %451 = vmatmul.mubr.f32.gmra.mrb[0].mxu0 %v62
    %v452 = vpop.f32.mrb[0].mxu0
    %v453 = vadd.f32 %v382, %v452
    %v454 = vpop.f32.mrb[0].mxu0
    %v455 = vadd.f32 %v384, %v454
    %456 = vdwg.mxu0
    %457 = vmatprep.subr.mxu0 %v67
    %458 = vmatpush1.msra.mxu0 %v66
    %459 = vmatprep.subr.mxu0 %v71
    %460 = vmatpush1.msra.mxu0 %v70
    %461 = vmatprep.subr.mxu0 %v75
    %462 = vmatpush1.msra.mxu0 %v74
    %463 = vmatprep.subr.mxu0 %v79
    %464 = vmatpush1.msra.mxu0 %v78
    %465 = vmatprep.subr.mxu0 %v83
    %466 = vmatpush1.msra.mxu0 %v82
    %467 = vmatprep.subr.mxu0 %v87
    %468 = vmatpush1.msra.mxu0 %v86
    %469 = vmatprep.subr.mxu0 %v91
    %470 = vmatpush1.msra.mxu0 %v90
    %471 = vmatprep.subr.mxu0 %v95
    %472 = vmatpush1.msra.mxu0 %v94
    %473 = vmatprep.subr.mxu0 %v99
    %474 = vmatpush1.msra.mxu0 %v98
    %475 = vmatprep.subr.mxu0 %v103
    %476 = vmatpush1.msra.mxu0 %v102
    %477 = vmatprep.subr.mxu0 %v107
    %478 = vmatpush1.msra.mxu0 %v106
    %479 = vmatprep.subr.mxu0 %v111
    %480 = vmatpush1.msra.mxu0 %v110
    %481 = vmatprep.subr.mxu0 %v115
    %482 = vmatpush1.msra.mxu0 %v114
    %483 = vmatprep.subr.mxu0 %v119
    %484 = vmatpush1.msra.mxu0 %v118
    %485 = vmatprep.subr.mxu0 %v123
    %486 = vmatpush1.msra.mxu0 %v122
    %487 = vmatprep.subr.mxu0 %v127
    %488 = vmatpush1.msra.mxu0 %v126
    %489 = vmatprep.subr.mxu0 %v131
    %490 = vmatpush1.msra.mxu0 %v130
    %491 = vmatprep.subr.mxu0 %v135
    %492 = vmatpush1.msra.mxu0 %v134
    %493 = vmatprep.subr.mxu0 %v139
    %494 = vmatpush1.msra.mxu0 %v138
    %495 = vmatprep.subr.mxu0 %v143
    %496 = vmatpush1.msra.mxu0 %v142
    %497 = vmatprep.subr.mxu0 %v147
    %498 = vmatpush1.msra.mxu0 %v146
    %499 = vmatprep.subr.mxu0 %v151
    %500 = vmatpush1.msra.mxu0 %v150
    %501 = vmatprep.subr.mxu0 %v155
    %502 = vmatpush1.msra.mxu0 %v154
    %503 = vmatprep.subr.mxu0 %v159
    %504 = vmatpush1.msra.mxu0 %v158
    %505 = vmatprep.subr.mxu0 %v163
    %506 = vmatpush1.msra.mxu0 %v162
    %507 = vmatprep.subr.mxu0 %v167
    %508 = vmatpush1.msra.mxu0 %v166
    %509 = vmatprep.subr.mxu0 %v171
    %510 = vmatpush1.msra.mxu0 %v170
    %511 = vmatprep.subr.mxu0 %v175
    %512 = vmatpush1.msra.mxu0 %v174
    %513 = vmatprep.subr.mxu0 %v179
    %514 = vmatpush1.msra.mxu0 %v178
    %515 = vmatprep.subr.mxu0 %v183
    %516 = vmatpush1.msra.mxu0 %v182
    %517 = vmatprep.subr.mxu0 %v187
    %518 = vmatpush1.msra.mxu0 %v186
    %519 = vmatprep.subr.mxu0 %v191
    %520 = vmatpush1.msra.mxu0 %v190
    %521 = vmatprep.mubr.f32.mxu0 %v61
    %522 = vmatmul.mubr.f32.gmra.mrb[0].mxu0 %v60
    %v523 = vpop.f32.mrb[0].mxu0
    %v524 = vadd.f32 %v289, %v523
    %v525 = vpop.f32.mrb[0].mxu0
    %v526 = vadd.f32 %v293, %v525
    %527 = vdwg.mxu0
    %528 = vmatprep.subr.mxu0 %v195
    %529 = vmatpush1.msra.mxu0 %v194
    %530 = vmatprep.subr.mxu0 %v199
    %531 = vmatpush1.msra.mxu0 %v198
    %532 = vmatprep.subr.mxu0 %v203
    %533 = vmatpush1.msra.mxu0 %v202
    %534 = vmatprep.subr.mxu0 %v207
    %535 = vmatpush1.msra.mxu0 %v206
    %536 = vmatprep.subr.mxu0 %v211
    %537 = vmatpush1.msra.mxu0 %v210
    %538 = vmatprep.subr.mxu0 %v215
    %539 = vmatpush1.msra.mxu0 %v214
    %540 = vmatprep.subr.mxu0 %v219
    %541 = vmatpush1.msra.mxu0 %v218
    %542 = vmatprep.subr.mxu0 %v223
    %543 = vmatpush1.msra.mxu0 %v222
    %544 = vmatprep.subr.mxu0 %v227
    %545 = vmatpush1.msra.mxu0 %v226
    %546 = vmatprep.subr.mxu0 %v231
    %547 = vmatpush1.msra.mxu0 %v230
    %548 = vmatprep.subr.mxu0 %v235
    %549 = vmatpush1.msra.mxu0 %v234
    %550 = vmatprep.subr.mxu0 %v239
    %551 = vmatpush1.msra.mxu0 %v238
    %552 = vmatprep.subr.mxu0 %v243
    %553 = vmatpush1.msra.mxu0 %v242
    %554 = vmatprep.subr.mxu0 %v247
    %555 = vmatpush1.msra.mxu0 %v246
    %556 = vmatprep.subr.mxu0 %v251
    %557 = vmatpush1.msra.mxu0 %v250
    %558 = vmatprep.subr.mxu0 %v255
    %559 = vmatpush1.msra.mxu0 %v254
    %560 = vmatprep.subr.mxu0 %v259
    %561 = vmatpush1.msra.mxu0 %v258
    %562 = vmatprep.subr.mxu0 %v263
    %563 = vmatpush1.msra.mxu0 %v262
    %564 = vmatprep.subr.mxu0 %v267
    %565 = vmatpush1.msra.mxu0 %v266
    %566 = vmatprep.subr.mxu0 %v271
    %567 = vmatpush1.msra.mxu0 %v270
    %568 = vmatprep.subr.mxu0 %v313
    %569 = vmatpush1.msra.mxu0 %v310
    %570 = vmatprep.subr.mxu0 0.0
    %571 = vmatpush1.msra.mxu0 0.0
    %572 = vmatprep.subr.mxu0 0.0
    %573 = vmatpush1.msra.mxu0 0.0
    %574 = vmatprep.subr.mxu0 0.0
    %575 = vmatpush1.msra.mxu0 0.0
    %576 = vmatprep.subr.mxu0 0.0
    %577 = vmatpush1.msra.mxu0 0.0
    %578 = vmatprep.subr.mxu0 0.0
    %579 = vmatpush1.msra.mxu0 0.0
    %580 = vmatprep.subr.mxu0 0.0
    %581 = vmatpush1.msra.mxu0 0.0
    %582 = vmatprep.subr.mxu0 0.0
    %583 = vmatpush1.msra.mxu0 0.0
    %584 = vmatprep.subr.mxu0 0.0
    %585 = vmatpush1.msra.mxu0 0.0
    %586 = vmatprep.subr.mxu0 0.0
    %587 = vmatpush1.msra.mxu0 0.0
    %588 = vmatprep.subr.mxu0 0.0
    %589 = vmatpush1.msra.mxu0 0.0
    %590 = vmatprep.subr.mxu0 0.0
    %591 = vmatpush1.msra.mxu0 0.0
    %592 = vmatprep.mubr.f32.mxu0 %v300
    %593 = vmatmul.mubr.f32.gmra.mrb[0].mxu0 %v62
    %v594 = vpop.f32.mrb[0].mxu0
    %v595 = vadd.f32 %v524, %v594
    %v596 = vpop.f32.mrb[0].mxu0
    %v597 = vadd.f32 %v526, %v596
    %598 = vdwg.mxu0
    %v599 = vmax.f32 %v453, 0.0
    %v600 = vmax.f32 %v455, 0.0
    %v601 = vmax.f32 %v595, 0.0
    %v602 = vmax.f32 %v597, 0.0
    %v603 = vld [vmem:[#allocation7] sm:$0xff]
    %v604 = vld [vmem:[#allocation7 + $0x8] sm:$0xff]
    %v605 = vld [vmem:[#allocation7 + $0x10] sm:$0xff]
    %v606 = vld [vmem:[#allocation7 + $0x18] sm:$0xff]
    %v607 = vld [vmem:[#allocation7 + $0x20] sm:$0xff]
    %v608 = vld [vmem:[#allocation7 + $0x28] sm:$0xff]
    %v609 = vld [vmem:[#allocation7 + $0x30] sm:$0xff]
    %v610 = vld [vmem:[#allocation7 + $0x38] sm:$0xff]
    %v611 = vld [vmem:[#allocation7 + $0x40] sm:$0xff]
    %v612 = vld [vmem:[#allocation7 + $0x48] sm:$0xff]
    %v613 = vld [vmem:[#allocation7 + $0x50] sm:$0xff]
    %v614 = vld [vmem:[#allocation7 + $0x58] sm:$0xff]
    %v615 = vld [vmem:[#allocation7 + $0x60] sm:$0xff]
    %v616 = vld [vmem:[#allocation7 + $0x68] sm:$0xff]
    %v617 = vld [vmem:[#allocation7 + $0x70] sm:$0xff]
    %v618 = vld [vmem:[#allocation7 + $0x78] sm:$0xff]
    %v619 = vld [vmem:[#allocation7 + $0x80] sm:$0xff]
    %v620 = vld [vmem:[#allocation7 + $0x88] sm:$0xff]
    %v621 = vld [vmem:[#allocation7 + $0x90] sm:$0xff]
    %v622 = vld [vmem:[#allocation7 + $0x98] sm:$0xff]
    %v623 = vld [vmem:[#allocation7 + $0xa0] sm:$0xff]
    %v624 = vld [vmem:[#allocation7 + $0xa8] sm:$0xff]
    %v625 = vld [vmem:[#allocation7 + $0xb0] sm:$0xff]
    %v626 = vld [vmem:[#allocation7 + $0xb8] sm:$0xff]
    %v627 = vld [vmem:[#allocation7 + $0xc0] sm:$0xff]
    %v628 = vld [vmem:[#allocation7 + $0xc8] sm:$0xff]
    %v629 = vld [vmem:[#allocation7 + $0xd0] sm:$0xff]
    %v630 = vld [vmem:[#allocation7 + $0xd8] sm:$0xff]
    %v631 = vld [vmem:[#allocation7 + $0xe0] sm:$0xff]
    %v632 = vld [vmem:[#allocation7 + $0xe8] sm:$0xff]
    %v633 = vld [vmem:[#allocation7 + $0xf0] sm:$0xff]
    %v634 = vld [vmem:[#allocation7 + $0xf8] sm:$0xff]
    %v635 = vld [vmem:[#allocation7 + $0x100] sm:$0xff]
    %v636 = vld [vmem:[#allocation7 + $0x108] sm:$0xff]
    %v637 = vld [vmem:[#allocation7 + $0x110] sm:$0xff]
    %v638 = vld [vmem:[#allocation7 + $0x118] sm:$0xff]
    %v639 = vld [vmem:[#allocation7 + $0x120] sm:$0xff]
    %v640 = vld [vmem:[#allocation7 + $0x128] sm:$0xff]
    %v641 = vld [vmem:[#allocation7 + $0x130] sm:$0xff]
    %v642 = vld [vmem:[#allocation7 + $0x138] sm:$0xff]
    %v643 = vld [vmem:[#allocation7 + $0x140] sm:$0xff]
    %v644 = vld [vmem:[#allocation7 + $0x148] sm:$0xff]
    %v645 = vld [vmem:[#allocation7 + $0x150] sm:$0xff]
    %v646 = vld [vmem:[#allocation7 + $0x158] sm:$0xff]
    %v647 = vld [vmem:[#allocation7 + $0x160] sm:$0xff]
    %v648 = vld [vmem:[#allocation7 + $0x168] sm:$0xff]
    %v649 = vld [vmem:[#allocation7 + $0x170] sm:$0xff]
    %v650 = vld [vmem:[#allocation7 + $0x178] sm:$0xff]
    %v651 = vld [vmem:[#allocation7 + $0x180] sm:$0xff]
    %v652 = vld [vmem:[#allocation7 + $0x188] sm:$0xff]
    %v653 = vld [vmem:[#allocation7 + $0x190] sm:$0xff]
    %v654 = vld [vmem:[#allocation7 + $0x198] sm:$0xff]
    %v655 = vld [vmem:[#allocation7 + $0x1a0] sm:$0xff]
    %v656 = vld [vmem:[#allocation7 + $0x1a8] sm:$0xff]
    %v657 = vld [vmem:[#allocation7 + $0x1b0] sm:$0xff]
    %v658 = vld [vmem:[#allocation7 + $0x1b8] sm:$0xff]
    %v659 = vld [vmem:[%s4] sm:$0x1]
    %v661 = vlaneseq
    %v662 = vshrl.u32 %v661, 7
    %v663 = vsub.s32 0, %v662
    %v664 = vrot.slane %v659, %v663
    %vm666 = vcmask 523264
    %v668 = vsel %vm666, %v602, 0
    %670 = vmatprep.subr.mxu0 0.0
    %671 = vmatpush1.msra.mxu0 %v603
    %672 = vmatprep.subr.mxu0 0.0
    %673 = vmatpush1.msra.mxu0 %v604
    %674 = vmatprep.subr.mxu0 0.0
    %675 = vmatpush1.msra.mxu0 %v605
    %676 = vmatprep.subr.mxu0 0.0
    %677 = vmatpush1.msra.mxu0 %v606
    %678 = vmatprep.subr.mxu0 0.0
    %679 = vmatpush1.msra.mxu0 %v607
    %680 = vmatprep.subr.mxu0 0.0
    %681 = vmatpush1.msra.mxu0 %v608
    %682 = vmatprep.subr.mxu0 0.0
    %683 = vmatpush1.msra.mxu0 %v609
    %684 = vmatprep.subr.mxu0 0.0
    %685 = vmatpush1.msra.mxu0 %v610
    %686 = vmatprep.subr.mxu0 0.0
    %687 = vmatpush1.msra.mxu0 %v611
    %688 = vmatprep.subr.mxu0 0.0
    %689 = vmatpush1.msra.mxu0 %v612
    %690 = vmatprep.subr.mxu0 0.0
    %691 = vmatpush1.msra.mxu0 %v613
    %692 = vmatprep.subr.mxu0 0.0
    %693 = vmatpush1.msra.mxu0 %v614
    %694 = vmatprep.subr.mxu0 0.0
    %695 = vmatpush1.msra.mxu0 %v615
    %696 = vmatprep.subr.mxu0 0.0
    %697 = vmatpush1.msra.mxu0 %v616
    %698 = vmatprep.subr.mxu0 0.0
    %699 = vmatpush1.msra.mxu0 %v617
    %700 = vmatprep.subr.mxu0 0.0
    %701 = vmatpush1.msra.mxu0 %v618
    %702 = vmatprep.subr.mxu0 0.0
    %703 = vmatpush1.msra.mxu0 %v619
    %704 = vmatprep.subr.mxu0 0.0
    %705 = vmatpush1.msra.mxu0 %v620
    %706 = vmatprep.subr.mxu0 0.0
    %707 = vmatpush1.msra.mxu0 %v621
    %708 = vmatprep.subr.mxu0 0.0
    %709 = vmatpush1.msra.mxu0 %v622
    %710 = vmatprep.subr.mxu0 0.0
    %711 = vmatpush1.msra.mxu0 %v623
    %712 = vmatprep.subr.mxu0 0.0
    %713 = vmatpush1.msra.mxu0 %v624
    %714 = vmatprep.subr.mxu0 0.0
    %715 = vmatpush1.msra.mxu0 %v625
    %716 = vmatprep.subr.mxu0 0.0
    %717 = vmatpush1.msra.mxu0 %v626
    %718 = vmatprep.subr.mxu0 0.0
    %719 = vmatpush1.msra.mxu0 %v627
    %720 = vmatprep.subr.mxu0 0.0
    %721 = vmatpush1.msra.mxu0 %v628
    %722 = vmatprep.subr.mxu0 0.0
    %723 = vmatpush1.msra.mxu0 %v629
    %724 = vmatprep.subr.mxu0 0.0
    %725 = vmatpush1.msra.mxu0 %v630
    %726 = vmatprep.subr.mxu0 0.0
    %727 = vmatpush1.msra.mxu0 %v631
    %728 = vmatprep.subr.mxu0 0.0
    %729 = vmatpush1.msra.mxu0 %v632
    %730 = vmatprep.subr.mxu0 0.0
    %731 = vmatpush1.msra.mxu0 %v633
    %732 = vmatprep.subr.mxu0 0.0
    %733 = vmatpush1.msra.mxu0 %v634
    %734 = vmatprep.mubr.f32.mxu0 %v600
    %735 = vmatmul.mubr.f32.gmra.mrb[0].mxu0 %v599
    %v736 = vpop.f32.mrb[0].mxu0
    %v737 = vadd.f32 %v664, %v736
    %v738 = vpop.f32.mrb[0].mxu0
    %739 = vdwg.mxu0
    %740 = vmatprep.subr.mxu0 0.0
    %741 = vmatpush1.msra.mxu0 %v635
    %742 = vmatprep.subr.mxu0 0.0
    %743 = vmatpush1.msra.mxu0 %v636
    %744 = vmatprep.subr.mxu0 0.0
    %745 = vmatpush1.msra.mxu0 %v637
    %746 = vmatprep.subr.mxu0 0.0
    %747 = vmatpush1.msra.mxu0 %v638
    %748 = vmatprep.subr.mxu0 0.0
    %749 = vmatpush1.msra.mxu0 %v639
    %750 = vmatprep.subr.mxu0 0.0
    %751 = vmatpush1.msra.mxu0 %v640
    %752 = vmatprep.subr.mxu0 0.0
    %753 = vmatpush1.msra.mxu0 %v641
    %754 = vmatprep.subr.mxu0 0.0
    %755 = vmatpush1.msra.mxu0 %v642
    %756 = vmatprep.subr.mxu0 0.0
    %757 = vmatpush1.msra.mxu0 %v643
    %758 = vmatprep.subr.mxu0 0.0
    %759 = vmatpush1.msra.mxu0 %v644
    %760 = vmatprep.subr.mxu0 0.0
    %761 = vmatpush1.msra.mxu0 %v645
    %762 = vmatprep.subr.mxu0 0.0
    %763 = vmatpush1.msra.mxu0 %v646
    %764 = vmatprep.subr.mxu0 0.0
    %765 = vmatpush1.msra.mxu0 %v647
    %766 = vmatprep.subr.mxu0 0.0
    %767 = vmatpush1.msra.mxu0 %v648
    %768 = vmatprep.subr.mxu0 0.0
    %769 = vmatpush1.msra.mxu0 %v649
    %770 = vmatprep.subr.mxu0 0.0
    %771 = vmatpush1.msra.mxu0 %v650
    %772 = vmatprep.subr.mxu0 0.0
    %773 = vmatpush1.msra.mxu0 %v651
    %774 = vmatprep.subr.mxu0 0.0
    %775 = vmatpush1.msra.mxu0 %v652
    %776 = vmatprep.subr.mxu0 0.0
    %777 = vmatpush1.msra.mxu0 %v653
    %778 = vmatprep.subr.mxu0 0.0
    %779 = vmatpush1.msra.mxu0 %v654
    %780 = vmatprep.subr.mxu0 0.0
    %781 = vmatpush1.msra.mxu0 %v655
    %782 = vmatprep.subr.mxu0 0.0
    %783 = vmatpush1.msra.mxu0 %v656
    %784 = vmatprep.subr.mxu0 0.0
    %785 = vmatpush1.msra.mxu0 %v657
    %786 = vmatprep.subr.mxu0 0.0
    %787 = vmatpush1.msra.mxu0 %v658
    %788 = vmatprep.subr.mxu0 0.0
    %789 = vmatpush1.msra.mxu0 0.0
    %790 = vmatprep.subr.mxu0 0.0
    %791 = vmatpush1.msra.mxu0 0.0
    %792 = vmatprep.subr.mxu0 0.0
    %793 = vmatpush1.msra.mxu0 0.0
    %794 = vmatprep.subr.mxu0 0.0
    %795 = vmatpush1.msra.mxu0 0.0
    %796 = vmatprep.subr.mxu0 0.0
    %797 = vmatpush1.msra.mxu0 0.0
    %798 = vmatprep.subr.mxu0 0.0
    %799 = vmatpush1.msra.mxu0 0.0
    %800 = vmatprep.subr.mxu0 0.0
    %801 = vmatpush1.msra.mxu0 0.0
    %802 = vmatprep.subr.mxu0 0.0
    %803 = vmatpush1.msra.mxu0 0.0
    %804 = vmatprep.mubr.f32.mxu0 %v668
    %805 = vmatmul.mubr.f32.gmra.mrb[0].mxu0 %v601
    %v806 = vpop.f32.mrb[0].mxu0
    %v807 = vadd.f32 %v737, %v806
    %v808 = vpop.f32.mrb[0].mxu0
    %809 = vdwg.mxu0
    %v810 = vlaneseq
    %v811 = vand.u32 %v810, 127
    %vm812 = vcmp.ge.s32.totalorder %v811, 0
    %vm813 = vcmp.lt.s32.totalorder %v811, 3
    %vm814 = vmand %vm812, %vm813
    %v815 = vsel %vm814, %v807, -1e+30
    %816 = vmax.xlane.f32.xlu0 %v815
    %v817 = vpop.xlane.xlu0 %816
    %vm818 = vcmp.ge.s32.totalorder %v811, 3
    %vm819 = vcmp.lt.s32.totalorder %v811, 6
    %vm820 = vmand %vm818, %vm819
    %v821 = vsel %vm820, %v807, -1e+30
    %822 = vmax.xlane.f32.xlu0 %v821
    %v823 = vpop.xlane.xlu0 %822
    %vm824 = vcmp.ge.s32.totalorder %v811, 6
    %vm825 = vcmp.lt.s32.totalorder %v811, 9
    %vm826 = vmand %vm824, %vm825
    %v827 = vsel %vm826, %v807, -1e+30
    %828 = vmax.xlane.f32.xlu0 %v827
    %v829 = vpop.xlane.xlu0 %828
    %v830 = vsel %vm825, %v829, %v807
    %v831 = vsel %vm819, %v823, %v830
    %v832 = vsel %vm813, %v817, %v831
    %v833 = vsub.f32 %v807, %v832
    %v834 = vmul.f32 %v833, 1.442695
    %v835 = vpow.pop %v834
    %v836 = vsel %vm814, %v835, 0.0
    %837 = vadd.xlane.f32.xlu0 %v836
    %v838 = vpop.xlane.xlu0 %837
    %v839 = vsel %vm820, %v835, 0.0
    %840 = vadd.xlane.f32.xlu0 %v839
    %v841 = vpop.xlane.xlu0 %840
    %v842 = vsel %vm826, %v835, 0.0
    %843 = vadd.xlane.f32.xlu0 %v842
    %v844 = vpop.xlane.xlu0 %843
    %v845 = vrcp.pop %v838
    %v846 = vmul.f32 1.0, %v845
    %v847 = vrcp.pop %v841
    %v848 = vmul.f32 1.0, %v847
    %v849 = vrcp.pop %v844
    %v850 = vmul.f32 1.0, %v849
    %v851 = vsel %vm825, %v850, 1.0
    %v852 = vsel %vm819, %v848, %v851
    %v853 = vsel %vm813, %v846, %v852
    %v854 = vmul.f32 %v835, %v853
    %vm855 = vcmp.eq.s32.totalorder %v811, 9
    %v856 = vsel %vm825, %v854, 0.0
    %v857 = vsel %vm855, %v807, %v856
    %858 = vst [vmem:[#allocation8] sm:$0xff] %v857
    // Predicated region
    $region34: #{tpu_custom_call.1} parent=1 // pred_check
      _
    $region35: #{tpu_custom_call.1} parent=1 // pred_check_branch
      %860 = sbr.rel (0) target = $region37
    $region36: #{tpu_custom_call.1} parent=1 // pred_region
      %s862 = ssub.s32 128, 128
      %863 = vsyncadd [#allocation4], %s862
      %s865 = sshll.u32 [#allocation8], 4
      %s866 = int_to_ptr.vmem [resolvable:$true] %s865
      %868 = dma.vmem_to_hbm [thread:$0]  %s866, 128, %s5, [#allocation4]
    $region37: #{tpu_custom_call.1} parent=1 // pred_fallthru
      _
    // Predicated region
    $region38: #{tpu_custom_call.1} parent=1 // pred_check
      _
    $region39: #{tpu_custom_call.1} parent=1 // pred_check_branch
      %870 = sbr.rel (0) target = $region41
    $region40: #{tpu_custom_call.1} parent=1 // pred_region
      %871 = dma.done [#allocation4], 128
    $region41: #{tpu_custom_call.1} parent=1 // pred_fallthru
      _
    %872 = vsyncpa [#allocation3], 1
    %873 = vsyncpa [#allocation6], 1
    %874 = vsyncpa [#allocation4], 1

</llo_original>
